<compile_context>
chip_gen: v7x
topology: tpu7x:2x2x1
jax: 0.10.0
libtpu: 0.0.40
codegen_flags: <defaults>
</compile_context>

<pallas_src>
import jax
import jax.numpy as jnp
from jax.experimental import pallas as pl
from jax.experimental.pallas import tpu as pltpu

H_IN = 4
H_HID = 4


def gru_last_kernel(x_ref, p_ref, o_ref):
    """One GRU step (PyTorch nn.GRU semantics, h0 = 0) for a single row.

    x_ref : SMEM (4,)     last observation row (scalars -> sreg splat)
    p_ref : VMEM (8, 16)  packed parameters:
              rows 0..3, lanes 0..11 : weight_ih_l0^T, gate order [r | z | n]
              row 4,     lanes 0..11 : [b_ir+b_hr | b_iz+b_hz | b_in]
              row 5,     lanes 0..3  : b_hn  (kept separate: gated by r)
    o_ref : VMEM (1, 4)   h'  (== out[-1])
    """
    p = p_ref[...]                                   # (8, 16), single vreg tile

    # x @ W_ih^T + bias as four scalar-broadcast MACs plus the bias row, all on
    # the VPU (K=4 / 12 live lanes would waste the MXU and pay push/pop latency).
    gi = (x_ref[0] * p[0:1, :]
          + x_ref[1] * p[1:2, :]
          + x_ref[2] * p[2:3, :]
          + x_ref[3] * p[3:4, :]
          + p[4:5, :])                               # (1, 16): [r | z | n | pad]

    r = jax.nn.sigmoid(gi[:, 0:4])                   # i_r + b_ir + b_hr
    z = jax.nn.sigmoid(gi[:, 4:8])                   # i_z + b_iz + b_hz
    n = jnp.tanh(gi[:, 8:12] + r * p[5:6, 0:4])      # i_n + b_in + r * b_hn
    # h' = (1 - z) * n + z * h0, with h0 == 0 (exact).
    o_ref[...] = ((1.0 - z) * n).astype(o_ref.dtype)


def _pack_params(weight_ih, weight_hh, bias_ih, bias_hh):
    """Pack GRU parameters once into a single (8, 16) f32 VMEM operand."""
    del weight_hh  # h0 == 0 -> all hidden-to-hidden matmuls vanish
    wi = jnp.asarray(weight_ih, jnp.float32)         # (12, 4), rows = [r, z, n]
    bi = jnp.asarray(bias_ih, jnp.float32)           # (12,)
    bh = jnp.asarray(bias_hh, jnp.float32)           # (12,)

    packed = jnp.zeros((8, 16), jnp.float32)
    packed = packed.at[0:4, 0:12].set(wi.T)                 # W_ih^T
    packed = packed.at[4, 0:8].set(bi[0:8] + bh[0:8])       # b_ir+b_hr | b_iz+b_hz
    packed = packed.at[4, 8:12].set(bi[8:12])               # b_in
    packed = packed.at[5, 0:4].set(bh[8:12])                # b_hn (r-gated)
    return packed


def make_preprocess_intruders(weight_ih, weight_hh, bias_ih, bias_hh):
    """Build the forward fn. Packing runs ONCE here, not per call."""
    packed = jax.block_until_ready(
        _pack_params(weight_ih, weight_hh, bias_ih, bias_hh))

    kernel_call = pl.pallas_call(
        gru_last_kernel,
        out_shape=jax.ShapeDtypeStruct((1, H_HID), jnp.float32),
        in_specs=[
            pl.BlockSpec(memory_space=pltpu.MemorySpace.SMEM),   # x_last: 4 scalars
            pl.BlockSpec(memory_space=pltpu.MemorySpace.VMEM),   # packed params
        ],
        out_specs=pl.BlockSpec(memory_space=pltpu.MemorySpace.VMEM),
    )

    @jax.jit
    def forward(int_observ):
        # (N, 4) -> only the last row ever reaches the returned out[-1].
        x = jnp.asarray(int_observ, jnp.float32).reshape(-1, H_IN)
        x_last = x[-1]                                           # (4,)
        return kernel_call(x_last, packed)                       # (1, 4)

    return forward


def _reference(int_observ, weight_ih, weight_hh, bias_ih, bias_hh):
    """Pure-JAX reference: batch of N independent single GRU steps, h0=0, out[-1]."""
    x = jnp.asarray(int_observ, jnp.float32)          # (N, 4)
    h0 = jnp.zeros((x.shape[0], H_HID), jnp.float32)
    gi = x @ weight_ih.T + bias_ih                    # (N, 12)
    gh = h0 @ weight_hh.T + bias_hh                   # (N, 12)
    i_r, i_z, i_n = gi[:, 0:4], gi[:, 4:8], gi[:, 8:12]
    h_r, h_z, h_n = gh[:, 0:4], gh[:, 4:8], gh[:, 8:12]
    r = jax.nn.sigmoid(i_r + h_r)
    z = jax.nn.sigmoid(i_z + h_z)
    nn_ = jnp.tanh(i_n + r * h_n)
    h_new = (1.0 - z) * nn_ + z * h0
    return h_new[-1:, :]


if __name__ == "__main__":
    key = jax.random.PRNGKey(0)
    k_x, k_wi, k_wh, k_bi, k_bh = jax.random.split(key, 5)

    # PyTorch-style uniform(-1/sqrt(H), 1/sqrt(H)) init.
    bound = 1.0 / jnp.sqrt(jnp.float32(H_HID))
    weight_ih = jax.random.uniform(k_wi, (3 * H_HID, H_IN), jnp.float32, -bound, bound)
    weight_hh = jax.random.uniform(k_wh, (3 * H_HID, H_HID), jnp.float32, -bound, bound)
    bias_ih = jax.random.uniform(k_bi, (3 * H_HID,), jnp.float32, -bound, bound)
    bias_hh = jax.random.uniform(k_bh, (3 * H_HID,), jnp.float32, -bound, bound)

    # Example intruder observations: N = 8 intruders, 4 features each.
    int_observ = jax.random.normal(k_x, (8, H_IN), jnp.float32)

    forward = make_preprocess_intruders(weight_ih, weight_hh, bias_ih, bias_hh)
    out = jax.block_until_ready(forward(int_observ))

    ref = _reference(int_observ, weight_ih, weight_hh, bias_ih, bias_hh)
    assert out.shape == (1, H_HID), out.shape
    assert jnp.allclose(out, ref, atol=1e-5, rtol=1e-5), (out, ref)

    print("KERNEL_OK")
</pallas_src>

<mosaic_0001>
module attributes {stable_mosaic.version = 11 : i64} {
  func.func @gru_last_kernel(%arg0: memref<4xf32, #tpu.memory_space<smem>>, %arg1: memref<8x16xf32, #tpu.memory_space<vmem>>, %arg2: memref<1x4xf32, #tpu.memory_space<vmem>>) attributes {dimension_semantics = [], scalar_prefetch = 0 : i64, scratch_operands = 0 : i64, tpu.core_type = #tpu.core_type<tc>} {
    %c0 = arith.constant 0 : index
    %c0_0 = arith.constant 0 : index
    %0 = vector.load %arg1[%c0, %c0_0] : memref<8x16xf32, #tpu.memory_space<vmem>>, vector<8x16xf32>
    %c0_1 = arith.constant 0 : index
    %1 = memref.load %arg0[%c0_1] : memref<4xf32, #tpu.memory_space<smem>>
    %2 = vector.extract_strided_slice %0 {offsets = [0, 0], sizes = [1, 16], strides = [1, 1]} : vector<8x16xf32> to vector<1x16xf32>
    %3 = vector.broadcast %1 : f32 to vector<1x16xf32>
    %4 = arith.mulf %3, %2 : vector<1x16xf32>
    %c1 = arith.constant 1 : index
    %5 = memref.load %arg0[%c1] : memref<4xf32, #tpu.memory_space<smem>>
    %6 = vector.extract_strided_slice %0 {offsets = [1, 0], sizes = [1, 16], strides = [1, 1]} : vector<8x16xf32> to vector<1x16xf32>
    %7 = vector.broadcast %5 : f32 to vector<1x16xf32>
    %8 = arith.mulf %7, %6 : vector<1x16xf32>
    %9 = arith.addf %4, %8 : vector<1x16xf32>
    %c2 = arith.constant 2 : index
    %10 = memref.load %arg0[%c2] : memref<4xf32, #tpu.memory_space<smem>>
    %11 = vector.extract_strided_slice %0 {offsets = [2, 0], sizes = [1, 16], strides = [1, 1]} : vector<8x16xf32> to vector<1x16xf32>
    %12 = vector.broadcast %10 : f32 to vector<1x16xf32>
    %13 = arith.mulf %12, %11 : vector<1x16xf32>
    %14 = arith.addf %9, %13 : vector<1x16xf32>
    %c3 = arith.constant 3 : index
    %15 = memref.load %arg0[%c3] : memref<4xf32, #tpu.memory_space<smem>>
    %16 = vector.extract_strided_slice %0 {offsets = [3, 0], sizes = [1, 16], strides = [1, 1]} : vector<8x16xf32> to vector<1x16xf32>
    %17 = vector.broadcast %15 : f32 to vector<1x16xf32>
    %18 = arith.mulf %17, %16 : vector<1x16xf32>
    %19 = arith.addf %14, %18 : vector<1x16xf32>
    %20 = vector.extract_strided_slice %0 {offsets = [4, 0], sizes = [1, 16], strides = [1, 1]} : vector<8x16xf32> to vector<1x16xf32>
    %21 = arith.addf %19, %20 : vector<1x16xf32>
    %22 = vector.extract_strided_slice %21 {offsets = [0, 0], sizes = [1, 4], strides = [1, 1]} : vector<1x16xf32> to vector<1x4xf32>
    %23 = arith.negf %22 : vector<1x4xf32>
    %24 = math.exp %23 : vector<1x4xf32>
    %cst = arith.constant 1.000000e+00 : f32
    %25 = vector.broadcast %cst : f32 to vector<1x4xf32>
    %26 = arith.addf %25, %24 : vector<1x4xf32>
    %27 = arith.divf %25, %26 : vector<1x4xf32>
    %28 = vector.extract_strided_slice %21 {offsets = [0, 4], sizes = [1, 4], strides = [1, 1]} : vector<1x16xf32> to vector<1x4xf32>
    %29 = arith.negf %28 : vector<1x4xf32>
    %30 = math.exp %29 : vector<1x4xf32>
    %cst_2 = arith.constant 1.000000e+00 : f32
    %31 = vector.broadcast %cst_2 : f32 to vector<1x4xf32>
    %32 = arith.addf %31, %30 : vector<1x4xf32>
    %33 = arith.divf %31, %32 : vector<1x4xf32>
    %34 = vector.extract_strided_slice %21 {offsets = [0, 8], sizes = [1, 4], strides = [1, 1]} : vector<1x16xf32> to vector<1x4xf32>
    %35 = vector.extract_strided_slice %0 {offsets = [5, 0], sizes = [1, 4], strides = [1, 1]} : vector<8x16xf32> to vector<1x4xf32>
    %36 = arith.mulf %27, %35 : vector<1x4xf32>
    %37 = arith.addf %34, %36 : vector<1x4xf32>
    %38 = math.tanh %37 : vector<1x4xf32>
    %cst_3 = arith.constant 1.000000e+00 : f32
    %39 = vector.broadcast %cst_3 : f32 to vector<1x4xf32>
    %40 = arith.subf %39, %33 : vector<1x4xf32>
    %41 = arith.mulf %40, %38 : vector<1x4xf32>
    %c0_4 = arith.constant 0 : index
    %c0_5 = arith.constant 0 : index
    %42 = vector.load %arg2[%c0_4, %c0_5] : memref<1x4xf32, #tpu.memory_space<vmem>>, vector<1x4xf32>
    tpu.vector_store %arg2[%c0_4, %c0_5], %41 {strides = array<i32>} : memref<1x4xf32, #tpu.memory_space<vmem>>, vector<1x4xf32>,
    return
  }
}

</mosaic_0001>

<llo_original>
// kernel: forward.1
$region0: #{forward.1}
  #allocation0 [shape = 'u32[]', space=smem, size = 0x4, offset = 0x4, fixed_abs, tag = 'smem constant byte address 0x4 - core index']
  #allocation1 [shape = 'u32[144,128]{1,0:T(1,128)}', space=vmem, size = 0x12000, scoped, tag = 'internal scratch']
  %s0 = inlined_call_operand.vmem [shape: f32[4], index: 0, kind: input, shape index: {}]
  %s1 = inlined_call_operand.vmem [shape: f32[8,16], index: 1, kind: input, shape index: {}]
  %s2 = inlined_call_operand.hbm [shape: f32[1,4], index: 2, kind: output, shape index: {}]
  %s3 = sld [smem:[#allocation0]]
  $region22: #{forward.1} parent=0
    _
  %s5 = ssub.s32 1, %s3
  %s6 = scalar_select 0, %s5, %s3
  $region1: #{forward.1} parent=0
    #allocation2 [shape = 'u8[512]{0}', space=smem, size = 0x200, scoped, tag = 'input window, operand 0, single buffered']
    #allocation3 [shape = 's32[1]{0}', space=sflag, size = 0x4, scoped, tag = 'scoped memory for forward.1']
    #allocation4 [shape = 's32[1]{0}', space=sflag, size = 0x4, scoped, tag = 'scoped memory for forward.1']
    #allocation5 [shape = 'u8[512]{0}', space=vmem, size = 0x400, scoped, tag = 'output window, operand 0, single buffered']
    %7 = vsyncpa [#allocation4], 0
    %8 = vsyncpa [#allocation3], 0
    // Predicated region
    $region2: #{forward.1} parent=1 // pred_check
      _
    $region3: #{forward.1} parent=1 // pred_check_branch
      %10 = sbr.rel (0) target = $region5
    $region4: #{forward.1} parent=1 // pred_region
      %s12 = ssub.s32 16, 16
      %13 = vsyncadd [#allocation4], %s12
      %s15 = sshll.u32 %s0, 4
      %s16 = int_to_ptr.vmem [resolvable:$true] %s15
      %18 = dma.vmem_to_smem %s16, 16, [#allocation2], [#allocation4]
    $region5: #{forward.1} parent=1 // pred_fallthru
      _
    // Predicated region
    $region6: #{forward.1} parent=1 // pred_check
      _
    $region7: #{forward.1} parent=1 // pred_check_branch
      %20 = sbr.rel (0) target = $region9
    $region8: #{forward.1} parent=1 // pred_region
      _
    $region9: #{forward.1} parent=1 // pred_fallthru
      _
    // Predicated region
    $region10: #{forward.1} parent=1 // pred_check
      _
    $region11: #{forward.1} parent=1 // pred_check_branch
      %22 = sbr.rel (0) target = $region13
    $region12: #{forward.1} parent=1 // pred_region
      %23 = dma.done [#allocation4], 16
    $region13: #{forward.1} parent=1 // pred_fallthru
      _
    %24 = sfence
    %v25 = vld [vmem:[%s1] sm:$0xff]
    %s26 = sld [smem:[#allocation2]]
    %v27 = vstv %s26
    %v28 = vmul.f32 %v27, %v25
    %s29 = sld [smem:[#allocation2 + $0x1]]
    %v30 = vstv %s29
    %v31 = vmul.f32 %v30, %v25
    %v33 = vrot.slane %v31, 1
    %v35 = vadd.f32 %v28, %v33
    %s36 = sld [smem:[#allocation2 + $0x2]]
    %v37 = vstv %s36
    %v38 = vmul.f32 %v37, %v25
    %v40 = vrot.slane %v38, 2
    %v42 = vadd.f32 %v35, %v40
    %s43 = sld [smem:[#allocation2 + $0x3]]
    %v44 = vstv %s43
    %v45 = vmul.f32 %v44, %v25
    %v47 = vrot.slane %v45, 3
    %v49 = vadd.f32 %v42, %v47
    %v51 = vrot.slane %v25, 4
    %v53 = vadd.f32 %v49, %v51
    %v54 = vxor.u32 %v53, 2147483648
    %v55 = vmul.f32 %v54, 1.442695
    %v56 = vpow.pop %v55
    %v57 = vadd.f32 %v56, 1.0
    %v58 = vrcp.pop %v57
    %v59 = vmul.f32 1.0, %v58
    %v60 = vrot.slane %v25, 5
    %v62 = vmul.f32 %v59, %v60
    %64 = vrot.lane.b32.xlu0 %v62, 8
    %v65 = vpop.permute.xlu0 %64
    %v67 = vadd.f32 %v53, %v65
    %v68 = vtanh.pop %v67
    %v69 = vsub.f32 1.0, %v59
    %71 = vrot.lane.b32.xlu0 %v68, 124
    %v72 = vpop.permute.xlu0 %71
    %v74 = vmul.f32 %v69, %v72
    %76 = vrot.lane.b32.xlu0 %v74, 124
    %v77 = vpop.permute.xlu0 %76
    %vm79 = vcmask 24576
    %80 = vst.msk [vmem:[#allocation5] sm:$0x1] %vm79, %v77
    // Predicated region
    $region14: #{forward.1} parent=1 // pred_check
      _
    $region15: #{forward.1} parent=1 // pred_check_branch
      %82 = sbr.rel (0) target = $region17
    $region16: #{forward.1} parent=1 // pred_region
      %s84 = ssub.s32 16, 16
      %85 = vsyncadd [#allocation3], %s84
      %s87 = sshll.u32 [#allocation5], 4
      %s88 = int_to_ptr.vmem [resolvable:$true] %s87
      %90 = dma.vmem_to_hbm [thread:$0]  %s88, 16, %s2, [#allocation3]
    $region17: #{forward.1} parent=1 // pred_fallthru
      _
    // Predicated region
    $region18: #{forward.1} parent=1 // pred_check
      _
    $region19: #{forward.1} parent=1 // pred_check_branch
      %92 = sbr.rel (0) target = $region21
    $region20: #{forward.1} parent=1 // pred_region
      %93 = dma.done [#allocation3], 16
    $region21: #{forward.1} parent=1 // pred_fallthru
      _
    %94 = vsyncpa [#allocation3], 1
    %95 = vsyncpa [#allocation4], 1

</llo_original>
